<compile_context>
chip_gen: v5e
topology: v5e:2x2
jax: 0.10.0
libtpu: 0.0.40
codegen_flags: <defaults>
</compile_context>

<pallas_src>
import jax
import jax.numpy as jnp
from jax.experimental import pallas as pl
from jax.experimental.pallas import tpu as pltpu


def _round_up(x, m):
    return (x + m - 1) // m * m


def ligru_kernel(gx_ref, h0_ref, wh_ref, out_ref, h_scr):
    """One grid step = one chunk of timesteps for one batch block.

    gx_ref : (CHUNK_T, BB, 2*Hp)  precomputed x-projections (+ biases), time-major
    h0_ref : (BB, Hp)             initial hidden state for this batch block
    wh_ref : (Hp, 2*Hp)           stacked [W_h2z^T | W_h2h^T] (grid-invariant)
    out_ref: (CHUNK_T, BB, Hp)    hidden state after every timestep
    h_scr  : (BB, Hp) VMEM        hidden state carried across time chunks
    """
    tc = pl.program_id(1)

    @pl.when(tc == 0)
    def _():
        h_scr[...] = h0_ref[...]

    Hp = h_scr.shape[-1]
    chunk_t = gx_ref.shape[0]
    wh = wh_ref[...]  # hoisted: load the resident recurrent weights once per chunk

    def step(s, h):
        gx_t = gx_ref[s]                                       # (BB, 2*Hp)
        gh = jnp.dot(h, wh, preferred_element_type=jnp.float32)
        z = jax.nn.sigmoid(gx_t[:, :Hp] + gh[:, :Hp])          # update gate
        cand = jnp.maximum(gx_t[:, Hp:] + gh[:, Hp:], 0.0)     # ReLU candidate
        h_new = (1.0 - z) * h + z * cand
        out_ref[s] = h_new
        return h_new

    h_last = jax.lax.fori_loop(0, chunk_t, step, h_scr[...], unroll=True)
    h_scr[...] = h_last


def ligru_forward(x, h0, params, *, chunk_t=8, b_block=8):
    """Runs the LiGRUCell recurrence over x.

    x: (B, T, I) f32, h0: (B, H) f32.
    Returns (h_last (B, H), hs (T, B, H)) where hs[t] is the cell output at step t.
    """
    w_x2z, b_x2z, w_h2z, w_x2h, b_x2h, w_h2h = params
    B, T, I = x.shape
    H = w_h2z.shape[0]

    Hp = _round_up(H, 128)          # lane-aligned gate width
    Bp = _round_up(B, b_block)      # f32 sublane-aligned batch
    Tp = _round_up(T, chunk_t)

    # Stacked, zero-padded weights; gate layout [z | candidate] along 2*Hp.
    wx = jnp.zeros((I, 2 * Hp), jnp.float32)
    wx = wx.at[:, :H].set(w_x2z.T).at[:, Hp:Hp + H].set(w_x2h.T)
    bx = jnp.zeros((2 * Hp,), jnp.float32)
    bx = bx.at[:H].set(b_x2z).at[Hp:Hp + H].set(b_x2h)
    wh = jnp.zeros((Hp, 2 * Hp), jnp.float32)
    wh = wh.at[:H, :H].set(w_h2z.T).at[:H, Hp:Hp + H].set(w_h2h.T)
    # TODO(synk): on v6e/v7x cast wx/wh + matmul operands to bf16 (f32 accum);
    # kept f32 here so the demo matches the f32 reference to 1e-4.

    # Hoisted input projection: ONE tall matmul, emitted time-major (no
    # standalone transpose pass), biases folded in.
    gx = jnp.einsum('bti,ig->tbg', x, wx) + bx                 # (T, B, 2*Hp)
    gx = jnp.pad(gx, ((0, Tp - T), (0, Bp - B), (0, 0)))

    h0p = jnp.zeros((Bp, Hp), jnp.float32).at[:B, :H].set(h0)

    hs_pad = pl.pallas_call(
        ligru_kernel,
        out_shape=jax.ShapeDtypeStruct((Tp, Bp, Hp), jnp.float32),
        grid_spec=pltpu.PrefetchScalarGridSpec(
            num_scalar_prefetch=0,
            grid=(Bp // b_block, Tp // chunk_t),   # (parallel batch, serial time)
            in_specs=[
                pl.BlockSpec((chunk_t, b_block, 2 * Hp), lambda b, t: (t, b, 0)),
                pl.BlockSpec((b_block, Hp), lambda b, t: (b, 0)),
                pl.BlockSpec((Hp, 2 * Hp), lambda b, t: (0, 0)),   # resident weights
            ],
            out_specs=pl.BlockSpec((chunk_t, b_block, Hp), lambda b, t: (t, b, 0)),
            scratch_shapes=[pltpu.VMEM((b_block, Hp), jnp.float32)],
        ),
        compiler_params=pltpu.CompilerParams(
            dimension_semantics=("parallel", "arbitrary")),   # time must stay serial
    )(gx, h0p, wh)

    hs = hs_pad[:T, :B, :H]          # (T, B, H), time-major
    return hs[-1], hs


def init_params(key, input_size, hidden_size):
    """PyTorch nn.Linear default init: U(-1/sqrt(fan_in), +1/sqrt(fan_in))."""
    I, H = input_size, hidden_size
    ks = jax.random.split(key, 6)
    bi = 1.0 / jnp.sqrt(jnp.float32(I))
    bh = 1.0 / jnp.sqrt(jnp.float32(H))
    w_x2z = jax.random.uniform(ks[0], (H, I), jnp.float32, -bi, bi)
    b_x2z = jax.random.uniform(ks[1], (H,), jnp.float32, -bi, bi)
    w_h2z = jax.random.uniform(ks[2], (H, H), jnp.float32, -bh, bh)
    w_x2h = jax.random.uniform(ks[3], (H, I), jnp.float32, -bi, bi)
    b_x2h = jax.random.uniform(ks[4], (H,), jnp.float32, -bi, bi)
    w_h2h = jax.random.uniform(ks[5], (H, H), jnp.float32, -bh, bh)
    return (w_x2z, b_x2z, w_h2z, w_x2h, b_x2h, w_h2h)


def reference_forward(x, h0, params):
    """Pure-JAX reference matching the PyTorch LiGRUCell applied over time."""
    w_x2z, b_x2z, w_h2z, w_x2h, b_x2h, w_h2h = params

    def cell(h, x_t):
        z = jax.nn.sigmoid(x_t @ w_x2z.T + b_x2z + h @ w_h2z.T)
        cand = jnp.maximum(x_t @ w_x2h.T + b_x2h + h @ w_h2h.T, 0.0)
        h_new = (1.0 - z) * h + z * cand
        return h_new, h_new

    h_last, hs = jax.lax.scan(cell, h0, jnp.transpose(x, (1, 0, 2)))
    return h_last, hs


if __name__ == "__main__":
    B, T, I, H = 2, 8, 16, 32
    key = jax.random.PRNGKey(0)
    k_x, k_h, k_p = jax.random.split(key, 3)
    x = jax.random.normal(k_x, (B, T, I), jnp.float32)
    h0 = 0.1 * jax.random.normal(k_h, (B, H), jnp.float32)
    params = init_params(k_p, I, H)

    h_last, hs = ligru_forward(x, h0, params)
    h_last = jax.block_until_ready(h_last)
    hs = jax.block_until_ready(hs)

    h_last_ref, hs_ref = reference_forward(x, h0, params)
    assert h_last.shape == (B, H) and hs.shape == (T, B, H)
    assert jnp.allclose(hs, hs_ref, atol=1e-4, rtol=1e-4), (hs, hs_ref)
    assert jnp.allclose(h_last, h_last_ref, atol=1e-4, rtol=1e-4), (h_last, h_last_ref)
    print("KERNEL_OK")
</pallas_src>

<mosaic_0001>
module attributes {stable_mosaic.version = 11 : i64} {
  func.func @ligru_kernel(%arg0: i32, %arg1: i32, %arg2: memref<8x8x256xf32, #tpu.memory_space<vmem>>, %arg3: memref<8x128xf32, #tpu.memory_space<vmem>>, %arg4: memref<128x256xf32, #tpu.memory_space<vmem>>, %arg5: memref<8x8x128xf32, #tpu.memory_space<vmem>>, %arg6: memref<8x128xf32, #tpu.memory_space<vmem>>) attributes {dimension_semantics = [#tpu.dimension_semantics<parallel>, #tpu.dimension_semantics<arbitrary>], iteration_bounds = array<i64: 1, 1>, scalar_prefetch = 0 : i64, scratch_operands = 1 : i64, tpu.core_type = #tpu.core_type<tc>, window_params = [{transform_indices = @transform_0, window_bounds = array<i64: 8, 8, 256>}, {transform_indices = @transform_1, window_bounds = array<i64: 8, 128>}, {pipeline_mode = #tpu.pipeline_mode<synchronous>, transform_indices = @transform_2, window_bounds = array<i64: 128, 256>}, {transform_indices = @transform_3, window_bounds = array<i64: 8, 8, 128>}]} {
    %c0_i32 = arith.constant 0 : i32
    %0 = arith.cmpi eq, %arg1, %c0_i32 : i32
    %1 = arith.extui %0 : i1 to i32
    %c0_i32_0 = arith.constant 0 : i32
    %2 = arith.cmpi ne, %1, %c0_i32_0 : i32
    scf.if %2 {
      %c0_70 = arith.constant 0 : index
      %c0_71 = arith.constant 0 : index
      %214 = vector.load %arg3[%c0_70, %c0_71] : memref<8x128xf32, #tpu.memory_space<vmem>>, vector<8x128xf32>
      %c0_72 = arith.constant 0 : index
      %c0_73 = arith.constant 0 : index
      %215 = vector.load %arg6[%c0_72, %c0_73] : memref<8x128xf32, #tpu.memory_space<vmem>>, vector<8x128xf32>
      tpu.vector_store %arg6[%c0_72, %c0_73], %214 {strides = array<i32>} : memref<8x128xf32, #tpu.memory_space<vmem>>, vector<8x128xf32>,
    } else {
    }
    %c0 = arith.constant 0 : index
    %c0_1 = arith.constant 0 : index
    %3 = vector.load %arg4[%c0, %c0_1] : memref<128x256xf32, #tpu.memory_space<vmem>>, vector<128x256xf32>
    %c0_2 = arith.constant 0 : index
    %c0_3 = arith.constant 0 : index
    %4 = vector.load %arg6[%c0_2, %c0_3] : memref<8x128xf32, #tpu.memory_space<vmem>>, vector<8x128xf32>
    %c0_i32_4 = arith.constant 0 : i32
    %5 = arith.index_cast %c0_i32_4 : i32 to index
    %c0_5 = arith.constant 0 : index
    %c0_6 = arith.constant 0 : index
    %6 = vector.load %arg2[%5, %c0_5, %c0_6] : memref<8x8x256xf32, #tpu.memory_space<vmem>>, vector<1x8x256xf32>
    %7 = vector.shape_cast %6 : vector<1x8x256xf32> to vector<8x256xf32>
    %cst = arith.constant dense<0.000000e+00> : vector<8x256xf32>
    %8 = tpu.matmul %4, %3, %cst {dimension_numbers = #tpu.dot_dimension_numbers<[1], [0], [0], [1], [0, 0, 1, 1], [], []>} : vector<8x128xf32>, vector<128x256xf32>, vector<8x256xf32> -> vector<8x256xf32>
    %9 = vector.extract_strided_slice %7 {offsets = [0, 0], sizes = [8, 128], strides = [1, 1]} : vector<8x256xf32> to vector<8x128xf32>
    %10 = vector.extract_strided_slice %8 {offsets = [0, 0], sizes = [8, 128], strides = [1, 1]} : vector<8x256xf32> to vector<8x128xf32>
    %11 = arith.addf %9, %10 : vector<8x128xf32>
    %12 = arith.negf %11 : vector<8x128xf32>
    %13 = math.exp %12 : vector<8x128xf32>
    %cst_7 = arith.constant 1.000000e+00 : f32
    %14 = vector.broadcast %cst_7 : f32 to vector<8x128xf32>
    %15 = arith.addf %14, %13 : vector<8x128xf32>
    %16 = arith.divf %14, %15 : vector<8x128xf32>
    %17 = vector.extract_strided_slice %7 {offsets = [0, 128], sizes = [8, 128], strides = [1, 1]} : vector<8x256xf32> to vector<8x128xf32>
    %18 = vector.extract_strided_slice %8 {offsets = [0, 128], sizes = [8, 128], strides = [1, 1]} : vector<8x256xf32> to vector<8x128xf32>
    %19 = arith.addf %17, %18 : vector<8x128xf32>
    %cst_8 = arith.constant 0.000000e+00 : f32
    %20 = vector.broadcast %cst_8 : f32 to vector<8x128xf32>
    %21 = arith.maximumf %19, %20 : vector<8x128xf32>
    %cst_9 = arith.constant 1.000000e+00 : f32
    %22 = vector.broadcast %cst_9 : f32 to vector<8x128xf32>
    %23 = arith.subf %22, %16 : vector<8x128xf32>
    %24 = arith.mulf %23, %4 : vector<8x128xf32>
    %25 = arith.mulf %16, %21 : vector<8x128xf32>
    %26 = arith.addf %24, %25 : vector<8x128xf32>
    %27 = arith.index_cast %c0_i32_4 : i32 to index
    %c0_10 = arith.constant 0 : index
    %c0_11 = arith.constant 0 : index
    %28 = vector.load %arg5[%27, %c0_10, %c0_11] : memref<8x8x128xf32, #tpu.memory_space<vmem>>, vector<1x8x128xf32>
    %29 = vector.shape_cast %28 : vector<1x8x128xf32> to vector<8x128xf32>
    %30 = vector.shape_cast %26 : vector<8x128xf32> to vector<1x8x128xf32>
    tpu.vector_store %arg5[%27, %c0_10, %c0_11], %30 {strides = array<i32>} : memref<8x8x128xf32, #tpu.memory_space<vmem>>, vector<1x8x128xf32>,
    %c1_i32 = arith.constant 1 : i32
    %31 = arith.index_cast %c1_i32 : i32 to index
    %c0_12 = arith.constant 0 : index
    %c0_13 = arith.constant 0 : index
    %32 = vector.load %arg2[%31, %c0_12, %c0_13] : memref<8x8x256xf32, #tpu.memory_space<vmem>>, vector<1x8x256xf32>
    %33 = vector.shape_cast %32 : vector<1x8x256xf32> to vector<8x256xf32>
    %cst_14 = arith.constant dense<0.000000e+00> : vector<8x256xf32>
    %34 = tpu.matmul %26, %3, %cst_14 {dimension_numbers = #tpu.dot_dimension_numbers<[1], [0], [0], [1], [0, 0, 1, 1], [], []>} : vector<8x128xf32>, vector<128x256xf32>, vector<8x256xf32> -> vector<8x256xf32>
    %35 = vector.extract_strided_slice %33 {offsets = [0, 0], sizes = [8, 128], strides = [1, 1]} : vector<8x256xf32> to vector<8x128xf32>
    %36 = vector.extract_strided_slice %34 {offsets = [0, 0], sizes = [8, 128], strides = [1, 1]} : vector<8x256xf32> to vector<8x128xf32>
    %37 = arith.addf %35, %36 : vector<8x128xf32>
    %38 = arith.negf %37 : vector<8x128xf32>
    %39 = math.exp %38 : vector<8x128xf32>
    %cst_15 = arith.constant 1.000000e+00 : f32
    %40 = vector.broadcast %cst_15 : f32 to vector<8x128xf32>
    %41 = arith.addf %40, %39 : vector<8x128xf32>
    %42 = arith.divf %40, %41 : vector<8x128xf32>
    %43 = vector.extract_strided_slice %33 {offsets = [0, 128], sizes = [8, 128], strides = [1, 1]} : vector<8x256xf32> to vector<8x128xf32>
    %44 = vector.extract_strided_slice %34 {offsets = [0, 128], sizes = [8, 128], strides = [1, 1]} : vector<8x256xf32> to vector<8x128xf32>
    %45 = arith.addf %43, %44 : vector<8x128xf32>
    %cst_16 = arith.constant 0.000000e+00 : f32
    %46 = vector.broadcast %cst_16 : f32 to vector<8x128xf32>
    %47 = arith.maximumf %45, %46 : vector<8x128xf32>
    %cst_17 = arith.constant 1.000000e+00 : f32
    %48 = vector.broadcast %cst_17 : f32 to vector<8x128xf32>
    %49 = arith.subf %48, %42 : vector<8x128xf32>
    %50 = arith.mulf %49, %26 : vector<8x128xf32>
    %51 = arith.mulf %42, %47 : vector<8x128xf32>
    %52 = arith.addf %50, %51 : vector<8x128xf32>
    %53 = arith.index_cast %c1_i32 : i32 to index
    %c0_18 = arith.constant 0 : index
    %c0_19 = arith.constant 0 : index
    %54 = vector.load %arg5[%53, %c0_18, %c0_19] : memref<8x8x128xf32, #tpu.memory_space<vmem>>, vector<1x8x128xf32>
    %55 = vector.shape_cast %54 : vector<1x8x128xf32> to vector<8x128xf32>
    %56 = vector.shape_cast %52 : vector<8x128xf32> to vector<1x8x128xf32>
    tpu.vector_store %arg5[%53, %c0_18, %c0_19], %56 {strides = array<i32>} : memref<8x8x128xf32, #tpu.memory_space<vmem>>, vector<1x8x128xf32>,
    %c2_i32 = arith.constant 2 : i32
    %57 = arith.index_cast %c2_i32 : i32 to index
    %c0_20 = arith.constant 0 : index
    %c0_21 = arith.constant 0 : index
    %58 = vector.load %arg2[%57, %c0_20, %c0_21] : memref<8x8x256xf32, #tpu.memory_space<vmem>>, vector<1x8x256xf32>
    %59 = vector.shape_cast %58 : vector<1x8x256xf32> to vector<8x256xf32>
    %cst_22 = arith.constant dense<0.000000e+00> : vector<8x256xf32>
    %60 = tpu.matmul %52, %3, %cst_22 {dimension_numbers = #tpu.dot_dimension_numbers<[1], [0], [0], [1], [0, 0, 1, 1], [], []>} : vector<8x128xf32>, vector<128x256xf32>, vector<8x256xf32> -> vector<8x256xf32>
    %61 = vector.extract_strided_slice %59 {offsets = [0, 0], sizes = [8, 128], strides = [1, 1]} : vector<8x256xf32> to vector<8x128xf32>
    %62 = vector.extract_strided_slice %60 {offsets = [0, 0], sizes = [8, 128], strides = [1, 1]} : vector<8x256xf32> to vector<8x128xf32>
    %63 = arith.addf %61, %62 : vector<8x128xf32>
    %64 = arith.negf %63 : vector<8x128xf32>
    %65 = math.exp %64 : vector<8x128xf32>
    %cst_23 = arith.constant 1.000000e+00 : f32
    %66 = vector.broadcast %cst_23 : f32 to vector<8x128xf32>
    %67 = arith.addf %66, %65 : vector<8x128xf32>
    %68 = arith.divf %66, %67 : vector<8x128xf32>
    %69 = vector.extract_strided_slice %59 {offsets = [0, 128], sizes = [8, 128], strides = [1, 1]} : vector<8x256xf32> to vector<8x128xf32>
    %70 = vector.extract_strided_slice %60 {offsets = [0, 128], sizes = [8, 128], strides = [1, 1]} : vector<8x256xf32> to vector<8x128xf32>
    %71 = arith.addf %69, %70 : vector<8x128xf32>
    %cst_24 = arith.constant 0.000000e+00 : f32
    %72 = vector.broadcast %cst_24 : f32 to vector<8x128xf32>
    %73 = arith.maximumf %71, %72 : vector<8x128xf32>
    %cst_25 = arith.constant 1.000000e+00 : f32
    %74 = vector.broadcast %cst_25 : f32 to vector<8x128xf32>
    %75 = arith.subf %74, %68 : vector<8x128xf32>
    %76 = arith.mulf %75, %52 : vector<8x128xf32>
    %77 = arith.mulf %68, %73 : vector<8x128xf32>
    %78 = arith.addf %76, %77 : vector<8x128xf32>
    %79 = arith.index_cast %c2_i32 : i32 to index
    %c0_26 = arith.constant 0 : index
    %c0_27 = arith.constant 0 : index
    %80 = vector.load %arg5[%79, %c0_26, %c0_27] : memref<8x8x128xf32, #tpu.memory_space<vmem>>, vector<1x8x128xf32>
    %81 = vector.shape_cast %80 : vector<1x8x128xf32> to vector<8x128xf32>
    %82 = vector.shape_cast %78 : vector<8x128xf32> to vector<1x8x128xf32>
    tpu.vector_store %arg5[%79, %c0_26, %c0_27], %82 {strides = array<i32>} : memref<8x8x128xf32, #tpu.memory_space<vmem>>, vector<1x8x128xf32>,
    %c3_i32 = arith.constant 3 : i32
    %83 = arith.index_cast %c3_i32 : i32 to index
    %c0_28 = arith.constant 0 : index
    %c0_29 = arith.constant 0 : index
    %84 = vector.load %arg2[%83, %c0_28, %c0_29] : memref<8x8x256xf32, #tpu.memory_space<vmem>>, vector<1x8x256xf32>
    %85 = vector.shape_cast %84 : vector<1x8x256xf32> to vector<8x256xf32>
    %cst_30 = arith.constant dense<0.000000e+00> : vector<8x256xf32>
    %86 = tpu.matmul %78, %3, %cst_30 {dimension_numbers = #tpu.dot_dimension_numbers<[1], [0], [0], [1], [0, 0, 1, 1], [], []>} : vector<8x128xf32>, vector<128x256xf32>, vector<8x256xf32> -> vector<8x256xf32>
    %87 = vector.extract_strided_slice %85 {offsets = [0, 0], sizes = [8, 128], strides = [1, 1]} : vector<8x256xf32> to vector<8x128xf32>
    %88 = vector.extract_strided_slice %86 {offsets = [0, 0], sizes = [8, 128], strides = [1, 1]} : vector<8x256xf32> to vector<8x128xf32>
    %89 = arith.addf %87, %88 : vector<8x128xf32>
    %90 = arith.negf %89 : vector<8x128xf32>
    %91 = math.exp %90 : vector<8x128xf32>
    %cst_31 = arith.constant 1.000000e+00 : f32
    %92 = vector.broadcast %cst_31 : f32 to vector<8x128xf32>
    %93 = arith.addf %92, %91 : vector<8x128xf32>
    %94 = arith.divf %92, %93 : vector<8x128xf32>
    %95 = vector.extract_strided_slice %85 {offsets = [0, 128], sizes = [8, 128], strides = [1, 1]} : vector<8x256xf32> to vector<8x128xf32>
    %96 = vector.extract_strided_slice %86 {offsets = [0, 128], sizes = [8, 128], strides = [1, 1]} : vector<8x256xf32> to vector<8x128xf32>
    %97 = arith.addf %95, %96 : vector<8x128xf32>
    %cst_32 = arith.constant 0.000000e+00 : f32
    %98 = vector.broadcast %cst_32 : f32 to vector<8x128xf32>
    %99 = arith.maximumf %97, %98 : vector<8x128xf32>
    %cst_33 = arith.constant 1.000000e+00 : f32
    %100 = vector.broadcast %cst_33 : f32 to vector<8x128xf32>
    %101 = arith.subf %100, %94 : vector<8x128xf32>
    %102 = arith.mulf %101, %78 : vector<8x128xf32>
    %103 = arith.mulf %94, %99 : vector<8x128xf32>
    %104 = arith.addf %102, %103 : vector<8x128xf32>
    %105 = arith.index_cast %c3_i32 : i32 to index
    %c0_34 = arith.constant 0 : index
    %c0_35 = arith.constant 0 : index
    %106 = vector.load %arg5[%105, %c0_34, %c0_35] : memref<8x8x128xf32, #tpu.memory_space<vmem>>, vector<1x8x128xf32>
    %107 = vector.shape_cast %106 : vector<1x8x128xf32> to vector<8x128xf32>
    %108 = vector.shape_cast %104 : vector<8x128xf32> to vector<1x8x128xf32>
    tpu.vector_store %arg5[%105, %c0_34, %c0_35], %108 {strides = array<i32>} : memref<8x8x128xf32, #tpu.memory_space<vmem>>, vector<1x8x128xf32>,
    %c4_i32 = arith.constant 4 : i32
    %109 = arith.index_cast %c4_i32 : i32 to index
    %c0_36 = arith.constant 0 : index
    %c0_37 = arith.constant 0 : index
    %110 = vector.load %arg2[%109, %c0_36, %c0_37] : memref<8x8x256xf32, #tpu.memory_space<vmem>>, vector<1x8x256xf32>
    %111 = vector.shape_cast %110 : vector<1x8x256xf32> to vector<8x256xf32>
    %cst_38 = arith.constant dense<0.000000e+00> : vector<8x256xf32>
    %112 = tpu.matmul %104, %3, %cst_38 {dimension_numbers = #tpu.dot_dimension_numbers<[1], [0], [0], [1], [0, 0, 1, 1], [], []>} : vector<8x128xf32>, vector<128x256xf32>, vector<8x256xf32> -> vector<8x256xf32>
    %113 = vector.extract_strided_slice %111 {offsets = [0, 0], sizes = [8, 128], strides = [1, 1]} : vector<8x256xf32> to vector<8x128xf32>
    %114 = vector.extract_strided_slice %112 {offsets = [0, 0], sizes = [8, 128], strides = [1, 1]} : vector<8x256xf32> to vector<8x128xf32>
    %115 = arith.addf %113, %114 : vector<8x128xf32>
    %116 = arith.negf %115 : vector<8x128xf32>
    %117 = math.exp %116 : vector<8x128xf32>
    %cst_39 = arith.constant 1.000000e+00 : f32
    %118 = vector.broadcast %cst_39 : f32 to vector<8x128xf32>
    %119 = arith.addf %118, %117 : vector<8x128xf32>
    %120 = arith.divf %118, %119 : vector<8x128xf32>
    %121 = vector.extract_strided_slice %111 {offsets = [0, 128], sizes = [8, 128], strides = [1, 1]} : vector<8x256xf32> to vector<8x128xf32>
    %122 = vector.extract_strided_slice %112 {offsets = [0, 128], sizes = [8, 128], strides = [1, 1]} : vector<8x256xf32> to vector<8x128xf32>
    %123 = arith.addf %121, %122 : vector<8x128xf32>
    %cst_40 = arith.constant 0.000000e+00 : f32
    %124 = vector.broadcast %cst_40 : f32 to vector<8x128xf32>
    %125 = arith.maximumf %123, %124 : vector<8x128xf32>
    %cst_41 = arith.constant 1.000000e+00 : f32
    %126 = vector.broadcast %cst_41 : f32 to vector<8x128xf32>
    %127 = arith.subf %126, %120 : vector<8x128xf32>
    %128 = arith.mulf %127, %104 : vector<8x128xf32>
    %129 = arith.mulf %120, %125 : vector<8x128xf32>
    %130 = arith.addf %128, %129 : vector<8x128xf32>
    %131 = arith.index_cast %c4_i32 : i32 to index
    %c0_42 = arith.constant 0 : index
    %c0_43 = arith.constant 0 : index
    %132 = vector.load %arg5[%131, %c0_42, %c0_43] : memref<8x8x128xf32, #tpu.memory_space<vmem>>, vector<1x8x128xf32>
    %133 = vector.shape_cast %132 : vector<1x8x128xf32> to vector<8x128xf32>
    %134 = vector.shape_cast %130 : vector<8x128xf32> to vector<1x8x128xf32>
    tpu.vector_store %arg5[%131, %c0_42, %c0_43], %134 {strides = array<i32>} : memref<8x8x128xf32, #tpu.memory_space<vmem>>, vector<1x8x128xf32>,
    %c5_i32 = arith.constant 5 : i32
    %135 = arith.index_cast %c5_i32 : i32 to index
    %c0_44 = arith.constant 0 : index
    %c0_45 = arith.constant 0 : index
    %136 = vector.load %arg2[%135, %c0_44, %c0_45] : memref<8x8x256xf32, #tpu.memory_space<vmem>>, vector<1x8x256xf32>
    %137 = vector.shape_cast %136 : vector<1x8x256xf32> to vector<8x256xf32>
    %cst_46 = arith.constant dense<0.000000e+00> : vector<8x256xf32>
    %138 = tpu.matmul %130, %3, %cst_46 {dimension_numbers = #tpu.dot_dimension_numbers<[1], [0], [0], [1], [0, 0, 1, 1], [], []>} : vector<8x128xf32>, vector<128x256xf32>, vector<8x256xf32> -> vector<8x256xf32>
    %139 = vector.extract_strided_slice %137 {offsets = [0, 0], sizes = [8, 128], strides = [1, 1]} : vector<8x256xf32> to vector<8x128xf32>
    %140 = vector.extract_strided_slice %138 {offsets = [0, 0], sizes = [8, 128], strides = [1, 1]} : vector<8x256xf32> to vector<8x128xf32>
    %141 = arith.addf %139, %140 : vector<8x128xf32>
    %142 = arith.negf %141 : vector<8x128xf32>
    %143 = math.exp %142 : vector<8x128xf32>
    %cst_47 = arith.constant 1.000000e+00 : f32
    %144 = vector.broadcast %cst_47 : f32 to vector<8x128xf32>
    %145 = arith.addf %144, %143 : vector<8x128xf32>
    %146 = arith.divf %144, %145 : vector<8x128xf32>
    %147 = vector.extract_strided_slice %137 {offsets = [0, 128], sizes = [8, 128], strides = [1, 1]} : vector<8x256xf32> to vector<8x128xf32>
    %148 = vector.extract_strided_slice %138 {offsets = [0, 128], sizes = [8, 128], strides = [1, 1]} : vector<8x256xf32> to vector<8x128xf32>
    %149 = arith.addf %147, %148 : vector<8x128xf32>
    %cst_48 = arith.constant 0.000000e+00 : f32
    %150 = vector.broadcast %cst_48 : f32 to vector<8x128xf32>
    %151 = arith.maximumf %149, %150 : vector<8x128xf32>
    %cst_49 = arith.constant 1.000000e+00 : f32
    %152 = vector.broadcast %cst_49 : f32 to vector<8x128xf32>
    %153 = arith.subf %152, %146 : vector<8x128xf32>
    %154 = arith.mulf %153, %130 : vector<8x128xf32>
    %155 = arith.mulf %146, %151 : vector<8x128xf32>
    %156 = arith.addf %154, %155 : vector<8x128xf32>
    %157 = arith.index_cast %c5_i32 : i32 to index
    %c0_50 = arith.constant 0 : index
    %c0_51 = arith.constant 0 : index
    %158 = vector.load %arg5[%157, %c0_50, %c0_51] : memref<8x8x128xf32, #tpu.memory_space<vmem>>, vector<1x8x128xf32>
    %159 = vector.shape_cast %158 : vector<1x8x128xf32> to vector<8x128xf32>
    %160 = vector.shape_cast %156 : vector<8x128xf32> to vector<1x8x128xf32>
    tpu.vector_store %arg5[%157, %c0_50, %c0_51], %160 {strides = array<i32>} : memref<8x8x128xf32, #tpu.memory_space<vmem>>, vector<1x8x128xf32>,
    %c6_i32 = arith.constant 6 : i32
    %161 = arith.index_cast %c6_i32 : i32 to index
    %c0_52 = arith.constant 0 : index
    %c0_53 = arith.constant 0 : index
    %162 = vector.load %arg2[%161, %c0_52, %c0_53] : memref<8x8x256xf32, #tpu.memory_space<vmem>>, vector<1x8x256xf32>
    %163 = vector.shape_cast %162 : vector<1x8x256xf32> to vector<8x256xf32>
    %cst_54 = arith.constant dense<0.000000e+00> : vector<8x256xf32>
    %164 = tpu.matmul %156, %3, %cst_54 {dimension_numbers = #tpu.dot_dimension_numbers<[1], [0], [0], [1], [0, 0, 1, 1], [], []>} : vector<8x128xf32>, vector<128x256xf32>, vector<8x256xf32> -> vector<8x256xf32>
    %165 = vector.extract_strided_slice %163 {offsets = [0, 0], sizes = [8, 128], strides = [1, 1]} : vector<8x256xf32> to vector<8x128xf32>
    %166 = vector.extract_strided_slice %164 {offsets = [0, 0], sizes = [8, 128], strides = [1, 1]} : vector<8x256xf32> to vector<8x128xf32>
    %167 = arith.addf %165, %166 : vector<8x128xf32>
    %168 = arith.negf %167 : vector<8x128xf32>
    %169 = math.exp %168 : vector<8x128xf32>
    %cst_55 = arith.constant 1.000000e+00 : f32
    %170 = vector.broadcast %cst_55 : f32 to vector<8x128xf32>
    %171 = arith.addf %170, %169 : vector<8x128xf32>
    %172 = arith.divf %170, %171 : vector<8x128xf32>
    %173 = vector.extract_strided_slice %163 {offsets = [0, 128], sizes = [8, 128], strides = [1, 1]} : vector<8x256xf32> to vector<8x128xf32>
    %174 = vector.extract_strided_slice %164 {offsets = [0, 128], sizes = [8, 128], strides = [1, 1]} : vector<8x256xf32> to vector<8x128xf32>
    %175 = arith.addf %173, %174 : vector<8x128xf32>
    %cst_56 = arith.constant 0.000000e+00 : f32
    %176 = vector.broadcast %cst_56 : f32 to vector<8x128xf32>
    %177 = arith.maximumf %175, %176 : vector<8x128xf32>
    %cst_57 = arith.constant 1.000000e+00 : f32
    %178 = vector.broadcast %cst_57 : f32 to vector<8x128xf32>
    %179 = arith.subf %178, %172 : vector<8x128xf32>
    %180 = arith.mulf %179, %156 : vector<8x128xf32>
    %181 = arith.mulf %172, %177 : vector<8x128xf32>
    %182 = arith.addf %180, %181 : vector<8x128xf32>
    %183 = arith.index_cast %c6_i32 : i32 to index
    %c0_58 = arith.constant 0 : index
    %c0_59 = arith.constant 0 : index
    %184 = vector.load %arg5[%183, %c0_58, %c0_59] : memref<8x8x128xf32, #tpu.memory_space<vmem>>, vector<1x8x128xf32>
    %185 = vector.shape_cast %184 : vector<1x8x128xf32> to vector<8x128xf32>
    %186 = vector.shape_cast %182 : vector<8x128xf32> to vector<1x8x128xf32>
    tpu.vector_store %arg5[%183, %c0_58, %c0_59], %186 {strides = array<i32>} : memref<8x8x128xf32, #tpu.memory_space<vmem>>, vector<1x8x128xf32>,
    %c7_i32 = arith.constant 7 : i32
    %187 = arith.index_cast %c7_i32 : i32 to index
    %c0_60 = arith.constant 0 : index
    %c0_61 = arith.constant 0 : index
    %188 = vector.load %arg2[%187, %c0_60, %c0_61] : memref<8x8x256xf32, #tpu.memory_space<vmem>>, vector<1x8x256xf32>
    %189 = vector.shape_cast %188 : vector<1x8x256xf32> to vector<8x256xf32>
    %cst_62 = arith.constant dense<0.000000e+00> : vector<8x256xf32>
    %190 = tpu.matmul %182, %3, %cst_62 {dimension_numbers = #tpu.dot_dimension_numbers<[1], [0], [0], [1], [0, 0, 1, 1], [], []>} : vector<8x128xf32>, vector<128x256xf32>, vector<8x256xf32> -> vector<8x256xf32>
    %191 = vector.extract_strided_slice %189 {offsets = [0, 0], sizes = [8, 128], strides = [1, 1]} : vector<8x256xf32> to vector<8x128xf32>
    %192 = vector.extract_strided_slice %190 {offsets = [0, 0], sizes = [8, 128], strides = [1, 1]} : vector<8x256xf32> to vector<8x128xf32>
    %193 = arith.addf %191, %192 : vector<8x128xf32>
    %194 = arith.negf %193 : vector<8x128xf32>
    %195 = math.exp %194 : vector<8x128xf32>
    %cst_63 = arith.constant 1.000000e+00 : f32
    %196 = vector.broadcast %cst_63 : f32 to vector<8x128xf32>
    %197 = arith.addf %196, %195 : vector<8x128xf32>
    %198 = arith.divf %196, %197 : vector<8x128xf32>
    %199 = vector.extract_strided_slice %189 {offsets = [0, 128], sizes = [8, 128], strides = [1, 1]} : vector<8x256xf32> to vector<8x128xf32>
    %200 = vector.extract_strided_slice %190 {offsets = [0, 128], sizes = [8, 128], strides = [1, 1]} : vector<8x256xf32> to vector<8x128xf32>
    %201 = arith.addf %199, %200 : vector<8x128xf32>
    %cst_64 = arith.constant 0.000000e+00 : f32
    %202 = vector.broadcast %cst_64 : f32 to vector<8x128xf32>
    %203 = arith.maximumf %201, %202 : vector<8x128xf32>
    %cst_65 = arith.constant 1.000000e+00 : f32
    %204 = vector.broadcast %cst_65 : f32 to vector<8x128xf32>
    %205 = arith.subf %204, %198 : vector<8x128xf32>
    %206 = arith.mulf %205, %182 : vector<8x128xf32>
    %207 = arith.mulf %198, %203 : vector<8x128xf32>
    %208 = arith.addf %206, %207 : vector<8x128xf32>
    %209 = arith.index_cast %c7_i32 : i32 to index
    %c0_66 = arith.constant 0 : index
    %c0_67 = arith.constant 0 : index
    %210 = vector.load %arg5[%209, %c0_66, %c0_67] : memref<8x8x128xf32, #tpu.memory_space<vmem>>, vector<1x8x128xf32>
    %211 = vector.shape_cast %210 : vector<1x8x128xf32> to vector<8x128xf32>
    %212 = vector.shape_cast %208 : vector<8x128xf32> to vector<1x8x128xf32>
    tpu.vector_store %arg5[%209, %c0_66, %c0_67], %212 {strides = array<i32>} : memref<8x8x128xf32, #tpu.memory_space<vmem>>, vector<1x8x128xf32>,
    %c8_i32 = arith.constant 8 : i32
    %c0_68 = arith.constant 0 : index
    %c0_69 = arith.constant 0 : index
    %213 = vector.load %arg6[%c0_68, %c0_69] : memref<8x128xf32, #tpu.memory_space<vmem>>, vector<8x128xf32>
    tpu.vector_store %arg6[%c0_68, %c0_69], %208 {strides = array<i32>} : memref<8x128xf32, #tpu.memory_space<vmem>>, vector<8x128xf32>,
    return
  }
  func.func @transform_0(%arg0: i32, %arg1: i32) -> (i32, i32, i32) {
    %c0_i32 = arith.constant 0 : i32
    %c0_i32_0 = arith.constant 0 : i32
    return %arg1, %arg0, %c0_i32 : i32, i32, i32
  }
  func.func @transform_1(%arg0: i32, %arg1: i32) -> (i32, i32) {
    %c0_i32 = arith.constant 0 : i32
    %c0_i32_0 = arith.constant 0 : i32
    return %arg0, %c0_i32 : i32, i32
  }
  func.func @transform_2(%arg0: i32, %arg1: i32) -> (i32, i32) {
    %c0_i32 = arith.constant 0 : i32
    %c0_i32_0 = arith.constant 0 : i32
    %c0_i32_1 = arith.constant 0 : i32
    return %c0_i32, %c0_i32_0 : i32, i32
  }
  func.func @transform_3(%arg0: i32, %arg1: i32) -> (i32, i32, i32) {
    %c0_i32 = arith.constant 0 : i32
    %c0_i32_0 = arith.constant 0 : i32
    return %arg1, %arg0, %c0_i32 : i32, i32, i32
  }
}

</mosaic_0001>

<llo_original>
// kernel: tpu_custom_call.1
$region0: #{tpu_custom_call.1}
  #allocation0 [shape = 'u32[]', space=smem, size = 0x4, offset = 0x4, fixed_abs, tag = 'smem constant byte address 0x4 - core index']
  #allocation1 [shape = 'u32[72,128]{1,0:T(1,128)}', space=vmem, size = 0x9000, scoped, tag = 'internal scratch']
  #allocation2 [shape = 'f32[8,128]{1,0:T(8,128)}', space=vmem, size = 0x1000, scoped, tag = 'scratch operand']
  %s0 = inlined_call_operand.hbm [shape: f32[8,8,256], index: 0, kind: input, shape index: {}]
  %s1 = inlined_call_operand.hbm [shape: f32[8,128], index: 1, kind: input, shape index: {}]
  %s2 = inlined_call_operand.hbm [shape: f32[128,256], index: 2, kind: input, shape index: {}]
  %s3 = inlined_call_operand.hbm [shape: f32[8,8,128], index: 3, kind: output, shape index: {}]
  %s4 = sld [smem:[#allocation0]]
  $region38: #{tpu_custom_call.1} parent=0
    _
  %s6 = ssub.s32 1, %s4
  %s7 = scalar_select 0, %s6, %s4
  $region1: #{tpu_custom_call.1} parent=0
    #allocation3 [shape = 'u8[65536]{0}', space=vmem, size = 0x10000, scoped, tag = 'input window, operand 0, single buffered']
    #allocation4 [shape = 's32[1]{0}', space=sflag, size = 0x4, scoped, tag = 'scoped memory for tpu_custom_call.1']
    #allocation5 [shape = 's32[1]{0}', space=sflag, size = 0x4, scoped, tag = 'scoped memory for tpu_custom_call.1']
    #allocation6 [shape = 'u8[4096]{0}', space=vmem, size = 0x1000, scoped, tag = 'input window, operand 1, single buffered']
    #allocation7 [shape = 's32[1]{0}', space=sflag, size = 0x4, scoped, tag = 'scoped memory for tpu_custom_call.1']
    #allocation8 [shape = 'u8[131072]{0}', space=vmem, size = 0x20000, scoped, tag = 'input window, operand 2, single buffered']
    #allocation9 [shape = 'u8[32768]{0}', space=vmem, size = 0x8000, scoped, tag = 'output window, operand 0, single buffered']
    %8 = vsyncpa [#allocation4], 0
    %9 = vsyncpa [#allocation7], 0
    %10 = vsyncpa [#allocation5], 0
    // Predicated region
    $region2: #{tpu_custom_call.1} parent=1 // pred_check
      _
    $region3: #{tpu_custom_call.1} parent=1 // pred_check_branch
      %12 = sbr.rel (0) target = $region5
    $region4: #{tpu_custom_call.1} parent=1 // pred_region
      %14 = vsyncadd [#allocation4], 0
      %s15 = sshll.u32 %s0, 4
      %s16 = int_to_ptr.hbm [resolvable:$true] %s15
      %s17 = sshll.u32 [#allocation3], 4
      %s18 = int_to_ptr.vmem [resolvable:$true] %s17
      %23 = dma.hbm_to_vmem [thread:$0]  %s16, 2048, %s18, [#allocation4], 256, 256, 16
    $region5: #{tpu_custom_call.1} parent=1 // pred_fallthru
      _
    // Predicated region
    $region6: #{tpu_custom_call.1} parent=1 // pred_check
      _
    $region7: #{tpu_custom_call.1} parent=1 // pred_check_branch
      %25 = sbr.rel (0) target = $region9
    $region8: #{tpu_custom_call.1} parent=1 // pred_region
      %27 = vsyncadd [#allocation7], 0
      %s29 = sshll.u32 %s1, 4
      %s30 = int_to_ptr.hbm [resolvable:$true] %s29
      %s31 = sshll.u32 [#allocation6], 4
      %s32 = int_to_ptr.vmem [resolvable:$true] %s31
      %34 = dma.hbm_to_vmem [thread:$0]  %s30, 128, %s32, [#allocation7]
    $region9: #{tpu_custom_call.1} parent=1 // pred_fallthru
      _
    // Predicated region
    $region10: #{tpu_custom_call.1} parent=1 // pred_check
      _
    $region11: #{tpu_custom_call.1} parent=1 // pred_check_branch
      %36 = sbr.rel (0) target = $region13
    $region12: #{tpu_custom_call.1} parent=1 // pred_region
      %38 = vsyncadd [#allocation7], 0
      %s39 = sshll.u32 %s2, 4
      %s40 = int_to_ptr.hbm [resolvable:$true] %s39
      %s41 = sshll.u32 [#allocation8], 4
      %s42 = int_to_ptr.vmem [resolvable:$true] %s41
      %47 = dma.hbm_to_vmem [thread:$0]  %s40, 4096, %s42, [#allocation7], 256, 256, 16
    $region13: #{tpu_custom_call.1} parent=1 // pred_fallthru
      _
    // Predicated region
    $region14: #{tpu_custom_call.1} parent=1 // pred_check
      _
    $region15: #{tpu_custom_call.1} parent=1 // pred_check_branch
      %49 = sbr.rel (0) target = $region17
    $region16: #{tpu_custom_call.1} parent=1 // pred_region
      %51 = dma.done [#allocation4], 2048
    $region17: #{tpu_custom_call.1} parent=1 // pred_fallthru
      _
    // Predicated region
    $region18: #{tpu_custom_call.1} parent=1 // pred_check
      _
    $region19: #{tpu_custom_call.1} parent=1 // pred_check_branch
      %53 = sbr.rel (0) target = $region21
    $region20: #{tpu_custom_call.1} parent=1 // pred_region
      %55 = dma.done [#allocation7], 128
    $region21: #{tpu_custom_call.1} parent=1 // pred_fallthru
      _
    // Predicated region
    $region22: #{tpu_custom_call.1} parent=1 // pred_check
      _
    $region23: #{tpu_custom_call.1} parent=1 // pred_check_branch
      %57 = sbr.rel (0) target = $region25
    $region24: #{tpu_custom_call.1} parent=1 // pred_region
      %59 = dma.done [#allocation7], 4096
    $region25: #{tpu_custom_call.1} parent=1 // pred_fallthru
      _
    %p60 = scmp.eq.s32.totalorder 0, 0
    // Predicated region
    $region26: #{tpu_custom_call.1} parent=1 // pred_check
      %p61 = pneg %p60
    $region27: #{tpu_custom_call.1} parent=1 // pred_check_branch
      %63 = sbr.rel (%p61) target = $region29
    $region28: #{tpu_custom_call.1} parent=1 // pred_region
      %v64 = vld [vmem:[#allocation6] sm:$0xff]
      %65 = vst [vmem:[#allocation2] sm:$0xff] %v64
    $region29: #{tpu_custom_call.1} parent=1 // pred_fallthru
      _
    %v66 = vld [vmem:[#allocation8] sm:$0xff]
    %v67 = vld [vmem:[#allocation8 + $0x8] sm:$0xff]
    %v68 = vld [vmem:[#allocation8 + $0x10] sm:$0xff]
    %v69 = vld [vmem:[#allocation8 + $0x18] sm:$0xff]
    %v70 = vld [vmem:[#allocation8 + $0x20] sm:$0xff]
    %v71 = vld [vmem:[#allocation8 + $0x28] sm:$0xff]
    %v72 = vld [vmem:[#allocation8 + $0x30] sm:$0xff]
    %v73 = vld [vmem:[#allocation8 + $0x38] sm:$0xff]
    %v74 = vld [vmem:[#allocation8 + $0x40] sm:$0xff]
    %v75 = vld [vmem:[#allocation8 + $0x48] sm:$0xff]
    %v76 = vld [vmem:[#allocation8 + $0x50] sm:$0xff]
    %v77 = vld [vmem:[#allocation8 + $0x58] sm:$0xff]
    %v78 = vld [vmem:[#allocation8 + $0x60] sm:$0xff]
    %v79 = vld [vmem:[#allocation8 + $0x68] sm:$0xff]
    %v80 = vld [vmem:[#allocation8 + $0x70] sm:$0xff]
    %v81 = vld [vmem:[#allocation8 + $0x78] sm:$0xff]
    %v82 = vld [vmem:[#allocation8 + $0x80] sm:$0xff]
    %v83 = vld [vmem:[#allocation8 + $0x88] sm:$0xff]
    %v84 = vld [vmem:[#allocation8 + $0x90] sm:$0xff]
    %v85 = vld [vmem:[#allocation8 + $0x98] sm:$0xff]
    %v86 = vld [vmem:[#allocation8 + $0xa0] sm:$0xff]
    %v87 = vld [vmem:[#allocation8 + $0xa8] sm:$0xff]
    %v88 = vld [vmem:[#allocation8 + $0xb0] sm:$0xff]
    %v89 = vld [vmem:[#allocation8 + $0xb8] sm:$0xff]
    %v90 = vld [vmem:[#allocation8 + $0xc0] sm:$0xff]
    %v91 = vld [vmem:[#allocation8 + $0xc8] sm:$0xff]
    %v92 = vld [vmem:[#allocation8 + $0xd0] sm:$0xff]
    %v93 = vld [vmem:[#allocation8 + $0xd8] sm:$0xff]
    %v94 = vld [vmem:[#allocation8 + $0xe0] sm:$0xff]
    %v95 = vld [vmem:[#allocation8 + $0xe8] sm:$0xff]
    %v96 = vld [vmem:[#allocation8 + $0xf0] sm:$0xff]
    %v97 = vld [vmem:[#allocation8 + $0xf8] sm:$0xff]
    %v98 = vld [vmem:[#allocation2] sm:$0xff]
    %v99 = vld [vmem:[#allocation3] sm:$0xff]
    %v100 = vld [vmem:[#allocation3 + $0x8] sm:$0xff]
    %101 = vmatpush.msra.mxu0 %v96
    %102 = vmatpush.msra.mxu0 %v94
    %103 = vmatpush.msra.mxu0 %v92
    %104 = vmatpush.msra.mxu0 %v90
    %105 = vmatpush.msra.mxu0 %v88
    %106 = vmatpush.msra.mxu0 %v86
    %107 = vmatpush.msra.mxu0 %v84
    %108 = vmatpush.msra.mxu0 %v82
    %109 = vmatpush.msra.mxu0 %v80
    %110 = vmatpush.msra.mxu0 %v78
    %111 = vmatpush.msra.mxu0 %v76
    %112 = vmatpush.msra.mxu0 %v74
    %113 = vmatpush.msra.mxu0 %v72
    %114 = vmatpush.msra.mxu0 %v70
    %115 = vmatpush.msra.mxu0 %v68
    %116 = vmatpush.msra.mxu0 %v66
    %117 = vmatmul.f32.gmra.mxu0 %v98
    %v118 = vpop.f32.mrf.mxu0
    %v119 = vadd.f32 0.0, %v118
    %120 = vdwg.mxu0
    %121 = vmatpush.msra.mxu0 %v97
    %122 = vmatpush.msra.mxu0 %v95
    %123 = vmatpush.msra.mxu0 %v93
    %124 = vmatpush.msra.mxu0 %v91
    %125 = vmatpush.msra.mxu0 %v89
    %126 = vmatpush.msra.mxu0 %v87
    %127 = vmatpush.msra.mxu0 %v85
    %128 = vmatpush.msra.mxu0 %v83
    %129 = vmatpush.msra.mxu0 %v81
    %130 = vmatpush.msra.mxu0 %v79
    %131 = vmatpush.msra.mxu0 %v77
    %132 = vmatpush.msra.mxu0 %v75
    %133 = vmatpush.msra.mxu0 %v73
    %134 = vmatpush.msra.mxu0 %v71
    %135 = vmatpush.msra.mxu0 %v69
    %136 = vmatpush.msra.mxu0 %v67
    %137 = vmatmul.f32.gmra.mxu0 %v98
    %v138 = vpop.f32.mrf.mxu0
    %v139 = vadd.f32 0.0, %v138
    %140 = vdwg.mxu0
    %v141 = vadd.f32 %v99, %v119
    %v142 = vxor.u32 %v141, 2147483648
    %v143 = vmul.f32 %v142, 1.442695
    %v144 = vpow.pop %v143
    %v145 = vadd.f32 %v144, 1.0
    %v146 = vrcp.pop %v145
    %v147 = vmul.f32 %v145, %v146
    %v148 = vsub.f32 1.0, %v147
    %v149 = vmul.f32 %v146, %v148
    %v150 = vadd.f32 %v146, %v149
    %vm151 = vweird.f32 %v145
    %vm152 = vweird.f32 %v146
    %vm153 = vmor %vm151, %vm152
    %v154 = vsel %vm153, %v146, %v150
    %v155 = vand.u32 2147483647, %v145
    %vm156 = vcmp.eq.f32.partialorder %v155, 8.507059e+37
    %v157 = vand.u32 %v145, 2147483648
    %v158 = vor.u32 1.1754944e-38, %v157
    %v159 = vsel %vm156, %v158, %v154
    %v160 = vmul.f32 1.0, %v159
    %v161 = vadd.f32 %v100, %v139
    %v162 = vmax.f32 %v161, 0.0
    %v163 = vsub.f32 1.0, %v160
    %v164 = vmul.f32 %v163, %v98
    %v165 = vmul.f32 %v160, %v162
    %v166 = vadd.f32 %v164, %v165
    %167 = vst [vmem:[#allocation9] sm:$0xff] %v166
    %s168 = scalar_lea.vmem [#allocation3], 16
    %v169 = vld [vmem:[%s168] sm:$0xff]
    %v170 = vld [vmem:[%s168 + $0x8] sm:$0xff]
    %171 = vmatpush.msra.mxu0 %v96
    %172 = vmatpush.msra.mxu0 %v94
    %173 = vmatpush.msra.mxu0 %v92
    %174 = vmatpush.msra.mxu0 %v90
    %175 = vmatpush.msra.mxu0 %v88
    %176 = vmatpush.msra.mxu0 %v86
    %177 = vmatpush.msra.mxu0 %v84
    %178 = vmatpush.msra.mxu0 %v82
    %179 = vmatpush.msra.mxu0 %v80
    %180 = vmatpush.msra.mxu0 %v78
    %181 = vmatpush.msra.mxu0 %v76
    %182 = vmatpush.msra.mxu0 %v74
    %183 = vmatpush.msra.mxu0 %v72
    %184 = vmatpush.msra.mxu0 %v70
    %185 = vmatpush.msra.mxu0 %v68
    %186 = vmatpush.msra.mxu0 %v66
    %187 = vmatmul.f32.gmra.mxu0 %v166
    %v188 = vpop.f32.mrf.mxu0
    %v189 = vadd.f32 0.0, %v188
    %190 = vdwg.mxu0
    %191 = vmatpush.msra.mxu0 %v97
    %192 = vmatpush.msra.mxu0 %v95
    %193 = vmatpush.msra.mxu0 %v93
    %194 = vmatpush.msra.mxu0 %v91
    %195 = vmatpush.msra.mxu0 %v89
    %196 = vmatpush.msra.mxu0 %v87
    %197 = vmatpush.msra.mxu0 %v85
    %198 = vmatpush.msra.mxu0 %v83
    %199 = vmatpush.msra.mxu0 %v81
    %200 = vmatpush.msra.mxu0 %v79
    %201 = vmatpush.msra.mxu0 %v77
    %202 = vmatpush.msra.mxu0 %v75
    %203 = vmatpush.msra.mxu0 %v73
    %204 = vmatpush.msra.mxu0 %v71
    %205 = vmatpush.msra.mxu0 %v69
    %206 = vmatpush.msra.mxu0 %v67
    %207 = vmatmul.f32.gmra.mxu0 %v166
    %v208 = vpop.f32.mrf.mxu0
    %v209 = vadd.f32 0.0, %v208
    %210 = vdwg.mxu0
    %v211 = vadd.f32 %v169, %v189
    %v212 = vxor.u32 %v211, 2147483648
    %v213 = vmul.f32 %v212, 1.442695
    %v214 = vpow.pop %v213
    %v215 = vadd.f32 %v214, 1.0
    %v216 = vrcp.pop %v215
    %v217 = vmul.f32 %v215, %v216
    %v218 = vsub.f32 1.0, %v217
    %v219 = vmul.f32 %v216, %v218
    %v220 = vadd.f32 %v216, %v219
    %vm221 = vweird.f32 %v215
    %vm222 = vweird.f32 %v216
    %vm223 = vmor %vm221, %vm222
    %v224 = vsel %vm223, %v216, %v220
    %v225 = vand.u32 2147483647, %v215
    %vm226 = vcmp.eq.f32.partialorder %v225, 8.507059e+37
    %v227 = vand.u32 %v215, 2147483648
    %v228 = vor.u32 1.1754944e-38, %v227
    %v229 = vsel %vm226, %v228, %v224
    %v230 = vmul.f32 1.0, %v229
    %v231 = vadd.f32 %v170, %v209
    %v232 = vmax.f32 %v231, 0.0
    %v233 = vsub.f32 1.0, %v230
    %v234 = vmul.f32 %v233, %v166
    %v235 = vmul.f32 %v230, %v232
    %v236 = vadd.f32 %v234, %v235
    %s237 = scalar_lea.vmem [#allocation9], 8
    %238 = vst [vmem:[%s237] sm:$0xff] %v236
    %s239 = scalar_lea.vmem [#allocation3], 32
    %v240 = vld [vmem:[%s239] sm:$0xff]
    %v241 = vld [vmem:[%s239 + $0x8] sm:$0xff]
    %242 = vmatpush.msra.mxu0 %v96
    %243 = vmatpush.msra.mxu0 %v94
    %244 = vmatpush.msra.mxu0 %v92
    %245 = vmatpush.msra.mxu0 %v90
    %246 = vmatpush.msra.mxu0 %v88
    %247 = vmatpush.msra.mxu0 %v86
    %248 = vmatpush.msra.mxu0 %v84
    %249 = vmatpush.msra.mxu0 %v82
    %250 = vmatpush.msra.mxu0 %v80
    %251 = vmatpush.msra.mxu0 %v78
    %252 = vmatpush.msra.mxu0 %v76
    %253 = vmatpush.msra.mxu0 %v74
    %254 = vmatpush.msra.mxu0 %v72
    %255 = vmatpush.msra.mxu0 %v70
    %256 = vmatpush.msra.mxu0 %v68
    %257 = vmatpush.msra.mxu0 %v66
    %258 = vmatmul.f32.gmra.mxu0 %v236
    %v259 = vpop.f32.mrf.mxu0
    %v260 = vadd.f32 0.0, %v259
    %261 = vdwg.mxu0
    %262 = vmatpush.msra.mxu0 %v97
    %263 = vmatpush.msra.mxu0 %v95
    %264 = vmatpush.msra.mxu0 %v93
    %265 = vmatpush.msra.mxu0 %v91
    %266 = vmatpush.msra.mxu0 %v89
    %267 = vmatpush.msra.mxu0 %v87
    %268 = vmatpush.msra.mxu0 %v85
    %269 = vmatpush.msra.mxu0 %v83
    %270 = vmatpush.msra.mxu0 %v81
    %271 = vmatpush.msra.mxu0 %v79
    %272 = vmatpush.msra.mxu0 %v77
    %273 = vmatpush.msra.mxu0 %v75
    %274 = vmatpush.msra.mxu0 %v73
    %275 = vmatpush.msra.mxu0 %v71
    %276 = vmatpush.msra.mxu0 %v69
    %277 = vmatpush.msra.mxu0 %v67
    %278 = vmatmul.f32.gmra.mxu0 %v236
    %v279 = vpop.f32.mrf.mxu0
    %v280 = vadd.f32 0.0, %v279
    %281 = vdwg.mxu0
    %v282 = vadd.f32 %v240, %v260
    %v283 = vxor.u32 %v282, 2147483648
    %v284 = vmul.f32 %v283, 1.442695
    %v285 = vpow.pop %v284
    %v286 = vadd.f32 %v285, 1.0
    %v287 = vrcp.pop %v286
    %v288 = vmul.f32 %v286, %v287
    %v289 = vsub.f32 1.0, %v288
    %v290 = vmul.f32 %v287, %v289
    %v291 = vadd.f32 %v287, %v290
    %vm292 = vweird.f32 %v286
    %vm293 = vweird.f32 %v287
    %vm294 = vmor %vm292, %vm293
    %v295 = vsel %vm294, %v287, %v291
    %v296 = vand.u32 2147483647, %v286
    %vm297 = vcmp.eq.f32.partialorder %v296, 8.507059e+37
    %v298 = vand.u32 %v286, 2147483648
    %v299 = vor.u32 1.1754944e-38, %v298
    %v300 = vsel %vm297, %v299, %v295
    %v301 = vmul.f32 1.0, %v300
    %v302 = vadd.f32 %v241, %v280
    %v303 = vmax.f32 %v302, 0.0
    %v304 = vsub.f32 1.0, %v301
    %v305 = vmul.f32 %v304, %v236
    %v306 = vmul.f32 %v301, %v303
    %v307 = vadd.f32 %v305, %v306
    %s308 = scalar_lea.vmem [#allocation9], 16
    %309 = vst [vmem:[%s308] sm:$0xff] %v307
    %s310 = scalar_lea.vmem [#allocation3], 48
    %v311 = vld [vmem:[%s310] sm:$0xff]
    %v312 = vld [vmem:[%s310 + $0x8] sm:$0xff]
    %313 = vmatpush.msra.mxu0 %v96
    %314 = vmatpush.msra.mxu0 %v94
    %315 = vmatpush.msra.mxu0 %v92
    %316 = vmatpush.msra.mxu0 %v90
    %317 = vmatpush.msra.mxu0 %v88
    %318 = vmatpush.msra.mxu0 %v86
    %319 = vmatpush.msra.mxu0 %v84
    %320 = vmatpush.msra.mxu0 %v82
    %321 = vmatpush.msra.mxu0 %v80
    %322 = vmatpush.msra.mxu0 %v78
    %323 = vmatpush.msra.mxu0 %v76
    %324 = vmatpush.msra.mxu0 %v74
    %325 = vmatpush.msra.mxu0 %v72
    %326 = vmatpush.msra.mxu0 %v70
    %327 = vmatpush.msra.mxu0 %v68
    %328 = vmatpush.msra.mxu0 %v66
    %329 = vmatmul.f32.gmra.mxu0 %v307
    %v330 = vpop.f32.mrf.mxu0
    %v331 = vadd.f32 0.0, %v330
    %332 = vdwg.mxu0
    %333 = vmatpush.msra.mxu0 %v97
    %334 = vmatpush.msra.mxu0 %v95
    %335 = vmatpush.msra.mxu0 %v93
    %336 = vmatpush.msra.mxu0 %v91
    %337 = vmatpush.msra.mxu0 %v89
    %338 = vmatpush.msra.mxu0 %v87
    %339 = vmatpush.msra.mxu0 %v85
    %340 = vmatpush.msra.mxu0 %v83
    %341 = vmatpush.msra.mxu0 %v81
    %342 = vmatpush.msra.mxu0 %v79
    %343 = vmatpush.msra.mxu0 %v77
    %344 = vmatpush.msra.mxu0 %v75
    %345 = vmatpush.msra.mxu0 %v73
    %346 = vmatpush.msra.mxu0 %v71
    %347 = vmatpush.msra.mxu0 %v69
    %348 = vmatpush.msra.mxu0 %v67
    %349 = vmatmul.f32.gmra.mxu0 %v307
    %v350 = vpop.f32.mrf.mxu0
    %v351 = vadd.f32 0.0, %v350
    %352 = vdwg.mxu0
    %v353 = vadd.f32 %v311, %v331
    %v354 = vxor.u32 %v353, 2147483648
    %v355 = vmul.f32 %v354, 1.442695
    %v356 = vpow.pop %v355
    %v357 = vadd.f32 %v356, 1.0
    %v358 = vrcp.pop %v357
    %v359 = vmul.f32 %v357, %v358
    %v360 = vsub.f32 1.0, %v359
    %v361 = vmul.f32 %v358, %v360
    %v362 = vadd.f32 %v358, %v361
    %vm363 = vweird.f32 %v357
    %vm364 = vweird.f32 %v358
    %vm365 = vmor %vm363, %vm364
    %v366 = vsel %vm365, %v358, %v362
    %v367 = vand.u32 2147483647, %v357
    %vm368 = vcmp.eq.f32.partialorder %v367, 8.507059e+37
    %v369 = vand.u32 %v357, 2147483648
    %v370 = vor.u32 1.1754944e-38, %v369
    %v371 = vsel %vm368, %v370, %v366
    %v372 = vmul.f32 1.0, %v371
    %v373 = vadd.f32 %v312, %v351
    %v374 = vmax.f32 %v373, 0.0
    %v375 = vsub.f32 1.0, %v372
    %v376 = vmul.f32 %v375, %v307
    %v377 = vmul.f32 %v372, %v374
    %v378 = vadd.f32 %v376, %v377
    %s379 = scalar_lea.vmem [#allocation9], 24
    %380 = vst [vmem:[%s379] sm:$0xff] %v378
    %s381 = scalar_lea.vmem [#allocation3], 64
    %v382 = vld [vmem:[%s381] sm:$0xff]
    %v383 = vld [vmem:[%s381 + $0x8] sm:$0xff]
    %384 = vmatpush.msra.mxu0 %v96
    %385 = vmatpush.msra.mxu0 %v94
    %386 = vmatpush.msra.mxu0 %v92
    %387 = vmatpush.msra.mxu0 %v90
    %388 = vmatpush.msra.mxu0 %v88
    %389 = vmatpush.msra.mxu0 %v86
    %390 = vmatpush.msra.mxu0 %v84
    %391 = vmatpush.msra.mxu0 %v82
    %392 = vmatpush.msra.mxu0 %v80
    %393 = vmatpush.msra.mxu0 %v78
    %394 = vmatpush.msra.mxu0 %v76
    %395 = vmatpush.msra.mxu0 %v74
    %396 = vmatpush.msra.mxu0 %v72
    %397 = vmatpush.msra.mxu0 %v70
    %398 = vmatpush.msra.mxu0 %v68
    %399 = vmatpush.msra.mxu0 %v66
    %400 = vmatmul.f32.gmra.mxu0 %v378
    %v401 = vpop.f32.mrf.mxu0
    %v402 = vadd.f32 0.0, %v401
    %403 = vdwg.mxu0
    %404 = vmatpush.msra.mxu0 %v97
    %405 = vmatpush.msra.mxu0 %v95
    %406 = vmatpush.msra.mxu0 %v93
    %407 = vmatpush.msra.mxu0 %v91
    %408 = vmatpush.msra.mxu0 %v89
    %409 = vmatpush.msra.mxu0 %v87
    %410 = vmatpush.msra.mxu0 %v85
    %411 = vmatpush.msra.mxu0 %v83
    %412 = vmatpush.msra.mxu0 %v81
    %413 = vmatpush.msra.mxu0 %v79
    %414 = vmatpush.msra.mxu0 %v77
    %415 = vmatpush.msra.mxu0 %v75
    %416 = vmatpush.msra.mxu0 %v73
    %417 = vmatpush.msra.mxu0 %v71
    %418 = vmatpush.msra.mxu0 %v69
    %419 = vmatpush.msra.mxu0 %v67
    %420 = vmatmul.f32.gmra.mxu0 %v378
    %v421 = vpop.f32.mrf.mxu0
    %v422 = vadd.f32 0.0, %v421
    %423 = vdwg.mxu0
    %v424 = vadd.f32 %v382, %v402
    %v425 = vxor.u32 %v424, 2147483648
    %v426 = vmul.f32 %v425, 1.442695
    %v427 = vpow.pop %v426
    %v428 = vadd.f32 %v427, 1.0
    %v429 = vrcp.pop %v428
    %v430 = vmul.f32 %v428, %v429
    %v431 = vsub.f32 1.0, %v430
    %v432 = vmul.f32 %v429, %v431
    %v433 = vadd.f32 %v429, %v432
    %vm434 = vweird.f32 %v428
    %vm435 = vweird.f32 %v429
    %vm436 = vmor %vm434, %vm435
    %v437 = vsel %vm436, %v429, %v433
    %v438 = vand.u32 2147483647, %v428
    %vm439 = vcmp.eq.f32.partialorder %v438, 8.507059e+37
    %v440 = vand.u32 %v428, 2147483648
    %v441 = vor.u32 1.1754944e-38, %v440
    %v442 = vsel %vm439, %v441, %v437
    %v443 = vmul.f32 1.0, %v442
    %v444 = vadd.f32 %v383, %v422
    %v445 = vmax.f32 %v444, 0.0
    %v446 = vsub.f32 1.0, %v443
    %v447 = vmul.f32 %v446, %v378
    %v448 = vmul.f32 %v443, %v445
    %v449 = vadd.f32 %v447, %v448
    %s450 = scalar_lea.vmem [#allocation9], 32
    %451 = vst [vmem:[%s450] sm:$0xff] %v449
    %s452 = scalar_lea.vmem [#allocation3], 80
    %v453 = vld [vmem:[%s452] sm:$0xff]
    %v454 = vld [vmem:[%s452 + $0x8] sm:$0xff]
    %455 = vmatpush.msra.mxu0 %v96
    %456 = vmatpush.msra.mxu0 %v94
    %457 = vmatpush.msra.mxu0 %v92
    %458 = vmatpush.msra.mxu0 %v90
    %459 = vmatpush.msra.mxu0 %v88
    %460 = vmatpush.msra.mxu0 %v86
    %461 = vmatpush.msra.mxu0 %v84
    %462 = vmatpush.msra.mxu0 %v82
    %463 = vmatpush.msra.mxu0 %v80
    %464 = vmatpush.msra.mxu0 %v78
    %465 = vmatpush.msra.mxu0 %v76
    %466 = vmatpush.msra.mxu0 %v74
    %467 = vmatpush.msra.mxu0 %v72
    %468 = vmatpush.msra.mxu0 %v70
    %469 = vmatpush.msra.mxu0 %v68
    %470 = vmatpush.msra.mxu0 %v66
    %471 = vmatmul.f32.gmra.mxu0 %v449
    %v472 = vpop.f32.mrf.mxu0
    %v473 = vadd.f32 0.0, %v472
    %474 = vdwg.mxu0
    %475 = vmatpush.msra.mxu0 %v97
    %476 = vmatpush.msra.mxu0 %v95
    %477 = vmatpush.msra.mxu0 %v93
    %478 = vmatpush.msra.mxu0 %v91
    %479 = vmatpush.msra.mxu0 %v89
    %480 = vmatpush.msra.mxu0 %v87
    %481 = vmatpush.msra.mxu0 %v85
    %482 = vmatpush.msra.mxu0 %v83
    %483 = vmatpush.msra.mxu0 %v81
    %484 = vmatpush.msra.mxu0 %v79
    %485 = vmatpush.msra.mxu0 %v77
    %486 = vmatpush.msra.mxu0 %v75
    %487 = vmatpush.msra.mxu0 %v73
    %488 = vmatpush.msra.mxu0 %v71
    %489 = vmatpush.msra.mxu0 %v69
    %490 = vmatpush.msra.mxu0 %v67
    %491 = vmatmul.f32.gmra.mxu0 %v449
    %v492 = vpop.f32.mrf.mxu0
    %v493 = vadd.f32 0.0, %v492
    %494 = vdwg.mxu0
    %v495 = vadd.f32 %v453, %v473
    %v496 = vxor.u32 %v495, 2147483648
    %v497 = vmul.f32 %v496, 1.442695
    %v498 = vpow.pop %v497
    %v499 = vadd.f32 %v498, 1.0
    %v500 = vrcp.pop %v499
    %v501 = vmul.f32 %v499, %v500
    %v502 = vsub.f32 1.0, %v501
    %v503 = vmul.f32 %v500, %v502
    %v504 = vadd.f32 %v500, %v503
    %vm505 = vweird.f32 %v499
    %vm506 = vweird.f32 %v500
    %vm507 = vmor %vm505, %vm506
    %v508 = vsel %vm507, %v500, %v504
    %v509 = vand.u32 2147483647, %v499
    %vm510 = vcmp.eq.f32.partialorder %v509, 8.507059e+37
    %v511 = vand.u32 %v499, 2147483648
    %v512 = vor.u32 1.1754944e-38, %v511
    %v513 = vsel %vm510, %v512, %v508
    %v514 = vmul.f32 1.0, %v513
    %v515 = vadd.f32 %v454, %v493
    %v516 = vmax.f32 %v515, 0.0
    %v517 = vsub.f32 1.0, %v514
    %v518 = vmul.f32 %v517, %v449
    %v519 = vmul.f32 %v514, %v516
    %v520 = vadd.f32 %v518, %v519
    %s521 = scalar_lea.vmem [#allocation9], 40
    %522 = vst [vmem:[%s521] sm:$0xff] %v520
    %s523 = scalar_lea.vmem [#allocation3], 96
    %v524 = vld [vmem:[%s523] sm:$0xff]
    %v525 = vld [vmem:[%s523 + $0x8] sm:$0xff]
    %526 = vmatpush.msra.mxu0 %v96
    %527 = vmatpush.msra.mxu0 %v94
    %528 = vmatpush.msra.mxu0 %v92
    %529 = vmatpush.msra.mxu0 %v90
    %530 = vmatpush.msra.mxu0 %v88
    %531 = vmatpush.msra.mxu0 %v86
    %532 = vmatpush.msra.mxu0 %v84
    %533 = vmatpush.msra.mxu0 %v82
    %534 = vmatpush.msra.mxu0 %v80
    %535 = vmatpush.msra.mxu0 %v78
    %536 = vmatpush.msra.mxu0 %v76
    %537 = vmatpush.msra.mxu0 %v74
    %538 = vmatpush.msra.mxu0 %v72
    %539 = vmatpush.msra.mxu0 %v70
    %540 = vmatpush.msra.mxu0 %v68
    %541 = vmatpush.msra.mxu0 %v66
    %542 = vmatmul.f32.gmra.mxu0 %v520
    %v543 = vpop.f32.mrf.mxu0
    %v544 = vadd.f32 0.0, %v543
    %545 = vdwg.mxu0
    %546 = vmatpush.msra.mxu0 %v97
    %547 = vmatpush.msra.mxu0 %v95
    %548 = vmatpush.msra.mxu0 %v93
    %549 = vmatpush.msra.mxu0 %v91
    %550 = vmatpush.msra.mxu0 %v89
    %551 = vmatpush.msra.mxu0 %v87
    %552 = vmatpush.msra.mxu0 %v85
    %553 = vmatpush.msra.mxu0 %v83
    %554 = vmatpush.msra.mxu0 %v81
    %555 = vmatpush.msra.mxu0 %v79
    %556 = vmatpush.msra.mxu0 %v77
    %557 = vmatpush.msra.mxu0 %v75
    %558 = vmatpush.msra.mxu0 %v73
    %559 = vmatpush.msra.mxu0 %v71
    %560 = vmatpush.msra.mxu0 %v69
    %561 = vmatpush.msra.mxu0 %v67
    %562 = vmatmul.f32.gmra.mxu0 %v520
    %v563 = vpop.f32.mrf.mxu0
    %v564 = vadd.f32 0.0, %v563
    %565 = vdwg.mxu0
    %v566 = vadd.f32 %v524, %v544
    %v567 = vxor.u32 %v566, 2147483648
    %v568 = vmul.f32 %v567, 1.442695
    %v569 = vpow.pop %v568
    %v570 = vadd.f32 %v569, 1.0
    %v571 = vrcp.pop %v570
    %v572 = vmul.f32 %v570, %v571
    %v573 = vsub.f32 1.0, %v572
    %v574 = vmul.f32 %v571, %v573
    %v575 = vadd.f32 %v571, %v574
    %vm576 = vweird.f32 %v570
    %vm577 = vweird.f32 %v571
    %vm578 = vmor %vm576, %vm577
    %v579 = vsel %vm578, %v571, %v575
    %v580 = vand.u32 2147483647, %v570
    %vm581 = vcmp.eq.f32.partialorder %v580, 8.507059e+37
    %v582 = vand.u32 %v570, 2147483648
    %v583 = vor.u32 1.1754944e-38, %v582
    %v584 = vsel %vm581, %v583, %v579
    %v585 = vmul.f32 1.0, %v584
    %v586 = vadd.f32 %v525, %v564
    %v587 = vmax.f32 %v586, 0.0
    %v588 = vsub.f32 1.0, %v585
    %v589 = vmul.f32 %v588, %v520
    %v590 = vmul.f32 %v585, %v587
    %v591 = vadd.f32 %v589, %v590
    %s592 = scalar_lea.vmem [#allocation9], 48
    %593 = vst [vmem:[%s592] sm:$0xff] %v591
    %s594 = scalar_lea.vmem [#allocation3], 112
    %v595 = vld [vmem:[%s594] sm:$0xff]
    %v596 = vld [vmem:[%s594 + $0x8] sm:$0xff]
    %597 = vmatpush.msra.mxu0 %v96
    %598 = vmatpush.msra.mxu0 %v94
    %599 = vmatpush.msra.mxu0 %v92
    %600 = vmatpush.msra.mxu0 %v90
    %601 = vmatpush.msra.mxu0 %v88
    %602 = vmatpush.msra.mxu0 %v86
    %603 = vmatpush.msra.mxu0 %v84
    %604 = vmatpush.msra.mxu0 %v82
    %605 = vmatpush.msra.mxu0 %v80
    %606 = vmatpush.msra.mxu0 %v78
    %607 = vmatpush.msra.mxu0 %v76
    %608 = vmatpush.msra.mxu0 %v74
    %609 = vmatpush.msra.mxu0 %v72
    %610 = vmatpush.msra.mxu0 %v70
    %611 = vmatpush.msra.mxu0 %v68
    %612 = vmatpush.msra.mxu0 %v66
    %613 = vmatmul.f32.gmra.mxu0 %v591
    %v614 = vpop.f32.mrf.mxu0
    %v615 = vadd.f32 0.0, %v614
    %616 = vdwg.mxu0
    %617 = vmatpush.msra.mxu0 %v97
    %618 = vmatpush.msra.mxu0 %v95
    %619 = vmatpush.msra.mxu0 %v93
    %620 = vmatpush.msra.mxu0 %v91
    %621 = vmatpush.msra.mxu0 %v89
    %622 = vmatpush.msra.mxu0 %v87
    %623 = vmatpush.msra.mxu0 %v85
    %624 = vmatpush.msra.mxu0 %v83
    %625 = vmatpush.msra.mxu0 %v81
    %626 = vmatpush.msra.mxu0 %v79
    %627 = vmatpush.msra.mxu0 %v77
    %628 = vmatpush.msra.mxu0 %v75
    %629 = vmatpush.msra.mxu0 %v73
    %630 = vmatpush.msra.mxu0 %v71
    %631 = vmatpush.msra.mxu0 %v69
    %632 = vmatpush.msra.mxu0 %v67
    %633 = vmatmul.f32.gmra.mxu0 %v591
    %v634 = vpop.f32.mrf.mxu0
    %v635 = vadd.f32 0.0, %v634
    %636 = vdwg.mxu0
    %v637 = vadd.f32 %v595, %v615
    %v638 = vxor.u32 %v637, 2147483648
    %v639 = vmul.f32 %v638, 1.442695
    %v640 = vpow.pop %v639
    %v641 = vadd.f32 %v640, 1.0
    %v642 = vrcp.pop %v641
    %v643 = vmul.f32 %v641, %v642
    %v644 = vsub.f32 1.0, %v643
    %v645 = vmul.f32 %v642, %v644
    %v646 = vadd.f32 %v642, %v645
    %vm647 = vweird.f32 %v641
    %vm648 = vweird.f32 %v642
    %vm649 = vmor %vm647, %vm648
    %v650 = vsel %vm649, %v642, %v646
    %v651 = vand.u32 2147483647, %v641
    %vm652 = vcmp.eq.f32.partialorder %v651, 8.507059e+37
    %v653 = vand.u32 %v641, 2147483648
    %v654 = vor.u32 1.1754944e-38, %v653
    %v655 = vsel %vm652, %v654, %v650
    %v656 = vmul.f32 1.0, %v655
    %v657 = vadd.f32 %v596, %v635
    %v658 = vmax.f32 %v657, 0.0
    %v659 = vsub.f32 1.0, %v656
    %v660 = vmul.f32 %v659, %v591
    %v661 = vmul.f32 %v656, %v658
    %v662 = vadd.f32 %v660, %v661
    %s663 = scalar_lea.vmem [#allocation9], 56
    %664 = vst [vmem:[%s663] sm:$0xff] %v662
    %665 = vst [vmem:[#allocation2] sm:$0xff] %v662
    // Predicated region
    $region30: #{tpu_custom_call.1} parent=1 // pred_check
      _
    $region31: #{tpu_custom_call.1} parent=1 // pred_check_branch
      %667 = sbr.rel (0) target = $region33
    $region32: #{tpu_custom_call.1} parent=1 // pred_region
      %669 = vsyncadd [#allocation5], 0
      %s670 = sshll.u32 [#allocation9], 4
      %s671 = int_to_ptr.vmem [resolvable:$true] %s670
      %s672 = sshll.u32 %s3, 4
      %s673 = int_to_ptr.hbm [resolvable:$true] %s672
      %678 = dma.vmem_to_hbm [thread:$0]  %s671, 1024, %s673, [#allocation5], 128, 128, 8
    $region33: #{tpu_custom_call.1} parent=1 // pred_fallthru
      _
    // Predicated region
    $region34: #{tpu_custom_call.1} parent=1 // pred_check
      _
    $region35: #{tpu_custom_call.1} parent=1 // pred_check_branch
      %680 = sbr.rel (0) target = $region37
    $region36: #{tpu_custom_call.1} parent=1 // pred_region
      %682 = dma.done [#allocation5], 1024
    $region37: #{tpu_custom_call.1} parent=1 // pred_fallthru
      _
    %683 = vsyncpa [#allocation4], 1
    %684 = vsyncpa [#allocation7], 1
    %685 = vsyncpa [#allocation5], 1

</llo_original>
